<compile_context>
chip_gen: v7x
topology: tpu7x:2x2x1
jax: 0.10.0
libtpu: 0.0.40
codegen_flags: <defaults>
</compile_context>

<pallas_src>
import jax
import jax.numpy as jnp
from jax.experimental import pallas as pl
from jax.experimental.pallas import tpu as pltpu

IN_FEATURES = 6 * 7 * 3      # 126
IN_PAD = 128                 # lane-aligned K for the first matmul
HIDDEN = 128
OUT_FEATURES = 7             # real logits
OUT_PAD = 128                # lane-dense output / N for the second matmul
NEG_BIG = -1e30              # kills padded lanes in the softmax


def _round_up(n, m):
    return ((n + m - 1) // m) * m


def fc_model_kernel(x_ref, w1_ref, b1_ref, w2_ref, b2_ref, act_ref, o_ref):
    """Fused: Linear -> ReLU -> Linear -> action-mask add -> softmax."""
    x = x_ref[...]                                           # (TB, 128)

    # layer1 + ReLU (K = 128, one clean MXU pass)
    h = jnp.dot(x, w1_ref[...], preferred_element_type=jnp.float32)
    h = jnp.maximum(h + b1_ref[...], 0.0)                    # (TB, 128)

    # layer2 (N padded to 128, zero columns)
    logits = jnp.dot(h, w2_ref[...], preferred_element_type=jnp.float32)
    logits = logits + b2_ref[...]                            # (TB, 128)

    # Action mask: where(actions > 0.5, 0, -10000) on the 7 real lanes;
    # large-negative on lanes >= 7 (incl. the original 8th "pass" action and
    # the padding) so they vanish from the softmax.
    act = act_ref[...]                                       # (TB, 128)
    lane = jax.lax.broadcasted_iota(jnp.int32, logits.shape, 1)
    mask_add = jnp.where(act > 0.5, 0.0, -10000.0)
    mask_add = jnp.where(lane < OUT_FEATURES, mask_add, NEG_BIG)
    logits = logits + mask_add

    # Numerically stable softmax along the lane dim.
    m = jnp.max(logits, axis=-1, keepdims=True)
    e = jnp.exp(logits - m)
    denom = jnp.sum(e, axis=-1, keepdims=True)
    o_ref[...] = e * pl.reciprocal(denom, approx=True)       # EUP reciprocal


def fc_model_forward(x, actions, params, *, batch_tile=1024):
    """x: (B, 6, 7, 3) float32; actions: (B, 8) float32 (action mask)."""
    w1, b1, w2, b2 = params
    B = x.shape[0]

    # Flatten (matches nn.Flatten) and zero-pad K 126 -> 128.
    x_flat = x.reshape(B, -1).astype(jnp.float32)
    x_flat = jnp.pad(x_flat, ((0, 0), (0, IN_PAD - IN_FEATURES)))

    # Pass the full 8-wide action mask, zero-padded to 128 lanes; the kernel
    # ignores lanes >= 7, which reproduces `actions[:, :-1]`.
    act = jnp.pad(actions.astype(jnp.float32),
                  ((0, 0), (0, OUT_PAD - actions.shape[1])))

    # Zero-pad weights/biases to lane-aligned shapes; math is unchanged.
    w1p = jnp.pad(w1.astype(jnp.float32), ((0, IN_PAD - IN_FEATURES), (0, 0)))
    w2p = jnp.pad(w2.astype(jnp.float32), ((0, 0), (0, OUT_PAD - OUT_FEATURES)))
    b1p = b1.astype(jnp.float32).reshape(1, HIDDEN)
    b2p = jnp.pad(b2.astype(jnp.float32),
                  (0, OUT_PAD - OUT_FEATURES)).reshape(1, OUT_PAD)

    # Batch tiling: TB is a multiple of 8, capped so double-buffered
    # (TB, 128) f32 blocks stay far under the scoped-VMEM limits on
    # v5e (16 MiB) / v6e (32 MiB) / v7x (32 MiB of 64 MiB physical).
    tb = min(batch_tile, _round_up(max(B, 8), 8))
    tb = _round_up(tb, 8)
    b_pad = _round_up(B, tb)
    if b_pad > B:
        x_flat = jnp.pad(x_flat, ((0, b_pad - B), (0, 0)))
        act = jnp.pad(act, ((0, b_pad - B), (0, 0)))

    out = pl.pallas_call(
        fc_model_kernel,
        out_shape=jax.ShapeDtypeStruct((b_pad, OUT_PAD), jnp.float32),
        grid=(b_pad // tb,),
        in_specs=[
            pl.BlockSpec((tb, IN_PAD), lambda i: (i, 0)),        # x   (streamed)
            pl.BlockSpec((IN_PAD, HIDDEN), lambda i: (0, 0)),    # w1  (resident)
            pl.BlockSpec((1, HIDDEN), lambda i: (0, 0)),         # b1  (resident)
            pl.BlockSpec((HIDDEN, OUT_PAD), lambda i: (0, 0)),   # w2  (resident)
            pl.BlockSpec((1, OUT_PAD), lambda i: (0, 0)),        # b2  (resident)
            pl.BlockSpec((tb, OUT_PAD), lambda i: (i, 0)),       # actions (streamed)
        ],
        out_specs=pl.BlockSpec((tb, OUT_PAD), lambda i: (i, 0)),
        compiler_params=pltpu.CompilerParams(
            dimension_semantics=("parallel",)),
    )(x_flat, w1p, b1p, w2p, b2p, act)

    return out[:B, :OUT_FEATURES]


def init_params(key):
    """Deterministic init mimicking nn.Linear shapes.

    Stored as (in, out) so the kernel does x @ W (equivalent to PyTorch's
    x @ W.T with W of shape (out, in))."""
    k1, k2, k3, k4 = jax.random.split(key, 4)
    bound1 = 1.0 / jnp.sqrt(IN_FEATURES)
    bound2 = 1.0 / jnp.sqrt(HIDDEN)
    w1 = jax.random.uniform(k1, (IN_FEATURES, HIDDEN), jnp.float32, -bound1, bound1)
    b1 = jax.random.uniform(k2, (HIDDEN,), jnp.float32, -bound1, bound1)
    w2 = jax.random.uniform(k3, (HIDDEN, OUT_FEATURES), jnp.float32, -bound2, bound2)
    b2 = jax.random.uniform(k4, (OUT_FEATURES,), jnp.float32, -bound2, bound2)
    return (w1, b1, w2, b2)


if __name__ == "__main__":
    key = jax.random.PRNGKey(0)
    k_params, k_x, k_act = jax.random.split(key, 3)

    B = 2
    params = init_params(k_params)

    # Board one-hot style input (B, 6, 7, 3) and an 8-way action mask (B, 8).
    x = jax.random.uniform(k_x, (B, 6, 7, 3), jnp.float32)
    actions = (jax.random.uniform(k_act, (B, 8), jnp.float32) > 0.4).astype(jnp.float32)
    # Guarantee at least one legal action among the first 7 per row so the
    # softmax is not degenerate.
    actions = actions.at[:, 0].set(1.0)

    probs = fc_model_forward(x, actions, params)
    jax.block_until_ready(probs)

    # Pure-JAX reference check.
    w1, b1, w2, b2 = params
    xf = x.reshape(B, -1)
    h = jnp.maximum(xf @ w1 + b1, 0.0)
    logits = h @ w2 + b2 + jnp.where(actions[:, :-1] > 0.5, 0.0, -10000.0)
    ref = jax.nn.softmax(logits, axis=-1)

    assert probs.shape == (B, OUT_FEATURES), f"bad shape {probs.shape}"
    # Slightly loose tolerance to accommodate the EUP approx reciprocal.
    assert jnp.allclose(probs, ref, atol=2e-3, rtol=2e-3), "mismatch vs reference"
    assert jnp.allclose(jnp.sum(probs, axis=-1), 1.0, atol=2e-3)

    print("KERNEL_OK")
</pallas_src>

<mosaic_0001>
module attributes {stable_mosaic.version = 11 : i64} {
  func.func @fc_model_kernel(%arg0: i32, %arg1: memref<8x128xf32, #tpu.memory_space<vmem>>, %arg2: memref<128x128xf32, #tpu.memory_space<vmem>>, %arg3: memref<1x128xf32, #tpu.memory_space<vmem>>, %arg4: memref<128x128xf32, #tpu.memory_space<vmem>>, %arg5: memref<1x128xf32, #tpu.memory_space<vmem>>, %arg6: memref<8x128xf32, #tpu.memory_space<vmem>>, %arg7: memref<8x128xf32, #tpu.memory_space<vmem>>) attributes {dimension_semantics = [#tpu.dimension_semantics<parallel>], iteration_bounds = array<i64: 1>, scalar_prefetch = 0 : i64, scratch_operands = 0 : i64, tpu.core_type = #tpu.core_type<tc>, window_params = [{transform_indices = @transform_0, window_bounds = array<i64: 8, 128>}, {pipeline_mode = #tpu.pipeline_mode<synchronous>, transform_indices = @transform_1, window_bounds = array<i64: 128, 128>}, {pipeline_mode = #tpu.pipeline_mode<synchronous>, transform_indices = @transform_2, window_bounds = array<i64: 1, 128>}, {pipeline_mode = #tpu.pipeline_mode<synchronous>, transform_indices = @transform_3, window_bounds = array<i64: 128, 128>}, {pipeline_mode = #tpu.pipeline_mode<synchronous>, transform_indices = @transform_4, window_bounds = array<i64: 1, 128>}, {transform_indices = @transform_5, window_bounds = array<i64: 8, 128>}, {transform_indices = @transform_6, window_bounds = array<i64: 8, 128>}]} {
    %c0 = arith.constant 0 : index
    %c0_0 = arith.constant 0 : index
    %0 = vector.load %arg1[%c0, %c0_0] : memref<8x128xf32, #tpu.memory_space<vmem>>, vector<8x128xf32>
    %c0_1 = arith.constant 0 : index
    %c0_2 = arith.constant 0 : index
    %1 = vector.load %arg2[%c0_1, %c0_2] : memref<128x128xf32, #tpu.memory_space<vmem>>, vector<128x128xf32>
    %cst = arith.constant dense<0.000000e+00> : vector<8x128xf32>
    %2 = tpu.matmul %0, %1, %cst {dimension_numbers = #tpu.dot_dimension_numbers<[1], [0], [0], [1], [0, 0, 1, 1], [], []>} : vector<8x128xf32>, vector<128x128xf32>, vector<8x128xf32> -> vector<8x128xf32>
    %c0_3 = arith.constant 0 : index
    %c0_4 = arith.constant 0 : index
    %3 = vector.load %arg3[%c0_3, %c0_4] : memref<1x128xf32, #tpu.memory_space<vmem>>, vector<1x128xf32>
    %4 = vector.broadcast %3 : vector<1x128xf32> to vector<8x128xf32>
    %5 = arith.addf %2, %4 : vector<8x128xf32>
    %cst_5 = arith.constant 0.000000e+00 : f32
    %6 = vector.broadcast %cst_5 : f32 to vector<8x128xf32>
    %7 = arith.maximumf %5, %6 : vector<8x128xf32>
    %c0_6 = arith.constant 0 : index
    %c0_7 = arith.constant 0 : index
    %8 = vector.load %arg4[%c0_6, %c0_7] : memref<128x128xf32, #tpu.memory_space<vmem>>, vector<128x128xf32>
    %cst_8 = arith.constant dense<0.000000e+00> : vector<8x128xf32>
    %9 = tpu.matmul %7, %8, %cst_8 {dimension_numbers = #tpu.dot_dimension_numbers<[1], [0], [0], [1], [0, 0, 1, 1], [], []>} : vector<8x128xf32>, vector<128x128xf32>, vector<8x128xf32> -> vector<8x128xf32>
    %c0_9 = arith.constant 0 : index
    %c0_10 = arith.constant 0 : index
    %10 = vector.load %arg5[%c0_9, %c0_10] : memref<1x128xf32, #tpu.memory_space<vmem>>, vector<1x128xf32>
    %11 = vector.broadcast %10 : vector<1x128xf32> to vector<8x128xf32>
    %12 = arith.addf %9, %11 : vector<8x128xf32>
    %c0_11 = arith.constant 0 : index
    %c0_12 = arith.constant 0 : index
    %13 = vector.load %arg6[%c0_11, %c0_12] : memref<8x128xf32, #tpu.memory_space<vmem>>, vector<8x128xf32>
    %14 = tpu.iota {dimensions = array<i32: 1>} : vector<8x128xi32>
    %cst_13 = arith.constant 5.000000e-01 : f32
    %15 = vector.broadcast %cst_13 : f32 to vector<8x128xf32>
    %16 = arith.cmpf ogt, %13, %15 : vector<8x128xf32>
    %cst_14 = arith.constant 0.000000e+00 : f32
    %cst_15 = arith.constant -1.000000e+04 : f32
    %17 = vector.broadcast %cst_14 : f32 to vector<8x128xf32>
    %18 = vector.broadcast %cst_15 : f32 to vector<8x128xf32>
    %19 = arith.select %16, %17, %18 : vector<8x128xi1>, vector<8x128xf32>
    %c7_i32 = arith.constant 7 : i32
    %20 = vector.broadcast %c7_i32 : i32 to vector<8x128xi32>
    %21 = arith.cmpi slt, %14, %20 : vector<8x128xi32>
    %cst_16 = arith.constant -1.000000e+30 : f32
    %22 = vector.broadcast %cst_16 : f32 to vector<8x128xf32>
    %23 = arith.select %21, %19, %22 : vector<8x128xi1>, vector<8x128xf32>
    %24 = arith.addf %12, %23 : vector<8x128xf32>
    %cst_17 = arith.constant dense<0xFF800000> : vector<8xf32>
    %25 = vector.multi_reduction <maximumf>, %24, %cst_17 [1] : vector<8x128xf32> to vector<8xf32>
    %26 = vector.shape_cast %25 : vector<8xf32> to vector<8x1xf32>
    %27 = vector.broadcast %26 : vector<8x1xf32> to vector<8x128xf32>
    %28 = arith.subf %24, %27 : vector<8x128xf32>
    %29 = math.exp %28 : vector<8x128xf32>
    %cst_18 = arith.constant dense<0.000000e+00> : vector<8xf32>
    %30 = vector.multi_reduction <add>, %29, %cst_18 [1] : vector<8x128xf32> to vector<8xf32>
    %31 = vector.shape_cast %30 : vector<8xf32> to vector<8x1xf32>
    %32 = tpu.reciprocal %31 {approx = true} : vector<8x1xf32> -> vector<8x1xf32>
    %33 = vector.broadcast %32 : vector<8x1xf32> to vector<8x128xf32>
    %34 = arith.mulf %29, %33 : vector<8x128xf32>
    %c0_19 = arith.constant 0 : index
    %c0_20 = arith.constant 0 : index
    %35 = vector.load %arg7[%c0_19, %c0_20] : memref<8x128xf32, #tpu.memory_space<vmem>>, vector<8x128xf32>
    tpu.vector_store %arg7[%c0_19, %c0_20], %34 {strides = array<i32>} : memref<8x128xf32, #tpu.memory_space<vmem>>, vector<8x128xf32>,
    return
  }
  func.func @transform_0(%arg0: i32) -> (i32, i32) {
    %c0_i32 = arith.constant 0 : i32
    %c0_i32_0 = arith.constant 0 : i32
    return %arg0, %c0_i32 : i32, i32
  }
  func.func @transform_1(%arg0: i32) -> (i32, i32) {
    %c0_i32 = arith.constant 0 : i32
    %c0_i32_0 = arith.constant 0 : i32
    %c0_i32_1 = arith.constant 0 : i32
    return %c0_i32, %c0_i32_0 : i32, i32
  }
  func.func @transform_2(%arg0: i32) -> (i32, i32) {
    %c0_i32 = arith.constant 0 : i32
    %c0_i32_0 = arith.constant 0 : i32
    %c0_i32_1 = arith.constant 0 : i32
    return %c0_i32, %c0_i32_0 : i32, i32
  }
  func.func @transform_3(%arg0: i32) -> (i32, i32) {
    %c0_i32 = arith.constant 0 : i32
    %c0_i32_0 = arith.constant 0 : i32
    %c0_i32_1 = arith.constant 0 : i32
    return %c0_i32, %c0_i32_0 : i32, i32
  }
  func.func @transform_4(%arg0: i32) -> (i32, i32) {
    %c0_i32 = arith.constant 0 : i32
    %c0_i32_0 = arith.constant 0 : i32
    %c0_i32_1 = arith.constant 0 : i32
    return %c0_i32, %c0_i32_0 : i32, i32
  }
  func.func @transform_5(%arg0: i32) -> (i32, i32) {
    %c0_i32 = arith.constant 0 : i32
    %c0_i32_0 = arith.constant 0 : i32
    return %arg0, %c0_i32 : i32, i32
  }
  func.func @transform_6(%arg0: i32) -> (i32, i32) {
    %c0_i32 = arith.constant 0 : i32
    %c0_i32_0 = arith.constant 0 : i32
    return %arg0, %c0_i32 : i32, i32
  }
}

</mosaic_0001>

<llo_original>
// kernel: tpu_custom_call.1
$region0: #{tpu_custom_call.1}
  #allocation0 [shape = 'u32[]', space=smem, size = 0x4, offset = 0x4, fixed_abs, tag = 'smem constant byte address 0x4 - core index']
  #allocation1 [shape = 'u32[144,128]{1,0:T(1,128)}', space=vmem, size = 0x12000, scoped, tag = 'internal scratch']
  %s0 = inlined_call_operand.hbm [shape: f32[8,128], index: 0, kind: input, shape index: {}]
  %s1 = inlined_call_operand.hbm [shape: f32[128,128], index: 1, kind: input, shape index: {}]
  %s2 = inlined_call_operand.vmem [shape: f32[1,128], index: 2, kind: input, shape index: {}]
  %s3 = inlined_call_operand.hbm [shape: f32[128,128], index: 3, kind: input, shape index: {}]
  %s4 = inlined_call_operand.vmem [shape: f32[1,128], index: 4, kind: input, shape index: {}]
  %s5 = inlined_call_operand.vmem [shape: f32[8,128], index: 5, kind: input, shape index: {}]
  %s6 = inlined_call_operand.hbm [shape: f32[8,128], index: 6, kind: output, shape index: {}]
  %s7 = sld [smem:[#allocation0]]
  $region46: #{tpu_custom_call.1} parent=0
    _
  %s9 = ssub.s32 1, %s7
  %s10 = scalar_select 0, %s9, %s7
  $region1: #{tpu_custom_call.1} parent=0
    #allocation2 [shape = 'u8[4096]{0}', space=vmem, size = 0x1000, scoped, tag = 'input window, operand 0, single buffered']
    #allocation3 [shape = 's32[1]{0}', space=sflag, size = 0x4, scoped, tag = 'scoped memory for tpu_custom_call.1']
    #allocation4 [shape = 's32[1]{0}', space=sflag, size = 0x4, scoped, tag = 'scoped memory for tpu_custom_call.1']
    #allocation5 [shape = 'u8[65536]{0}', space=vmem, size = 0x10000, scoped, tag = 'input window, operand 1, single buffered']
    #allocation6 [shape = 's32[1]{0}', space=sflag, size = 0x4, scoped, tag = 'scoped memory for tpu_custom_call.1']
    #allocation7 [shape = 'u8[65536]{0}', space=vmem, size = 0x10000, scoped, tag = 'input window, operand 3, single buffered']
    #allocation8 [shape = 'u8[4096]{0}', space=vmem, size = 0x1000, scoped, tag = 'output window, operand 0, single buffered']
    %11 = vsyncpa [#allocation3], 0
    %12 = vsyncpa [#allocation6], 0
    %13 = vsyncpa [#allocation4], 0
    // Predicated region
    $region2: #{tpu_custom_call.1} parent=1 // pred_check
      _
    $region3: #{tpu_custom_call.1} parent=1 // pred_check_branch
      %15 = sbr.rel (0) target = $region5
    $region4: #{tpu_custom_call.1} parent=1 // pred_region
      %s17 = ssub.s32 128, 128
      %18 = vsyncadd [#allocation3], %s17
      %s20 = sshll.u32 [#allocation2], 4
      %s21 = int_to_ptr.vmem [resolvable:$true] %s20
      %23 = dma.hbm_to_vmem [thread:$0]  %s0, 128, %s21, [#allocation3]
    $region5: #{tpu_custom_call.1} parent=1 // pred_fallthru
      _
    // Predicated region
    $region6: #{tpu_custom_call.1} parent=1 // pred_check
      _
    $region7: #{tpu_custom_call.1} parent=1 // pred_check_branch
      %25 = sbr.rel (0) target = $region9
    $region8: #{tpu_custom_call.1} parent=1 // pred_region
      %s27 = ssub.s32 2048, 2048
      %28 = vsyncadd [#allocation6], %s27
      %s29 = sshll.u32 [#allocation5], 4
      %s30 = int_to_ptr.vmem [resolvable:$true] %s29
      %35 = dma.hbm_to_vmem [thread:$0]  %s1, 2048, %s30, [#allocation6], 128, 128, 8
    $region9: #{tpu_custom_call.1} parent=1 // pred_fallthru
      _
    // Predicated region
    $region10: #{tpu_custom_call.1} parent=1 // pred_check
      _
    $region11: #{tpu_custom_call.1} parent=1 // pred_check_branch
      %37 = sbr.rel (0) target = $region13
    $region12: #{tpu_custom_call.1} parent=1 // pred_region
      _
    $region13: #{tpu_custom_call.1} parent=1 // pred_fallthru
      _
    // Predicated region
    $region14: #{tpu_custom_call.1} parent=1 // pred_check
      _
    $region15: #{tpu_custom_call.1} parent=1 // pred_check_branch
      %39 = sbr.rel (0) target = $region17
    $region16: #{tpu_custom_call.1} parent=1 // pred_region
      %s41 = ssub.s32 2048, 2048
      %42 = vsyncadd [#allocation6], %s41
      %s43 = sshll.u32 [#allocation7], 4
      %s44 = int_to_ptr.vmem [resolvable:$true] %s43
      %49 = dma.hbm_to_vmem [thread:$0]  %s3, 2048, %s44, [#allocation6], 128, 128, 8
    $region17: #{tpu_custom_call.1} parent=1 // pred_fallthru
      _
    // Predicated region
    $region18: #{tpu_custom_call.1} parent=1 // pred_check
      _
    $region19: #{tpu_custom_call.1} parent=1 // pred_check_branch
      %51 = sbr.rel (0) target = $region21
    $region20: #{tpu_custom_call.1} parent=1 // pred_region
      _
    $region21: #{tpu_custom_call.1} parent=1 // pred_fallthru
      _
    // Predicated region
    $region22: #{tpu_custom_call.1} parent=1 // pred_check
      _
    $region23: #{tpu_custom_call.1} parent=1 // pred_check_branch
      %53 = sbr.rel (0) target = $region25
    $region24: #{tpu_custom_call.1} parent=1 // pred_region
      _
    $region25: #{tpu_custom_call.1} parent=1 // pred_fallthru
      _
    // Predicated region
    $region26: #{tpu_custom_call.1} parent=1 // pred_check
      _
    $region27: #{tpu_custom_call.1} parent=1 // pred_check_branch
      %55 = sbr.rel (0) target = $region29
    $region28: #{tpu_custom_call.1} parent=1 // pred_region
      %56 = dma.done [#allocation3], 128
    $region29: #{tpu_custom_call.1} parent=1 // pred_fallthru
      _
    // Predicated region
    $region30: #{tpu_custom_call.1} parent=1 // pred_check
      _
    $region31: #{tpu_custom_call.1} parent=1 // pred_check_branch
      %58 = sbr.rel (0) target = $region33
    $region32: #{tpu_custom_call.1} parent=1 // pred_region
      %59 = dma.done [#allocation6], 2048
    $region33: #{tpu_custom_call.1} parent=1 // pred_fallthru
      _
    // Predicated region
    $region34: #{tpu_custom_call.1} parent=1 // pred_check
      _
    $region35: #{tpu_custom_call.1} parent=1 // pred_check_branch
      %61 = sbr.rel (0) target = $region37
    $region36: #{tpu_custom_call.1} parent=1 // pred_region
      %62 = dma.done [#allocation6], 2048
    $region37: #{tpu_custom_call.1} parent=1 // pred_fallthru
      _
    %v63 = vld [vmem:[#allocation2] sm:$0xff]
    %v64 = vld [vmem:[#allocation5] sm:$0xff]
    %v65 = vld [vmem:[#allocation5 + $0x8] sm:$0xff]
    %v66 = vld [vmem:[#allocation5 + $0x10] sm:$0xff]
    %v67 = vld [vmem:[#allocation5 + $0x18] sm:$0xff]
    %v68 = vld [vmem:[#allocation5 + $0x20] sm:$0xff]
    %v69 = vld [vmem:[#allocation5 + $0x28] sm:$0xff]
    %v70 = vld [vmem:[#allocation5 + $0x30] sm:$0xff]
    %v71 = vld [vmem:[#allocation5 + $0x38] sm:$0xff]
    %v72 = vld [vmem:[#allocation5 + $0x40] sm:$0xff]
    %v73 = vld [vmem:[#allocation5 + $0x48] sm:$0xff]
    %v74 = vld [vmem:[#allocation5 + $0x50] sm:$0xff]
    %v75 = vld [vmem:[#allocation5 + $0x58] sm:$0xff]
    %v76 = vld [vmem:[#allocation5 + $0x60] sm:$0xff]
    %v77 = vld [vmem:[#allocation5 + $0x68] sm:$0xff]
    %v78 = vld [vmem:[#allocation5 + $0x70] sm:$0xff]
    %v79 = vld [vmem:[#allocation5 + $0x78] sm:$0xff]
    %v80 = vld [vmem:[%s2] sm:$0x1]
    %v82 = vlaneseq
    %v83 = vshrl.u32 %v82, 7
    %v84 = vsub.s32 0, %v83
    %v85 = vrot.slane %v80, %v84
    %87 = vmatprep.subr.mxu0 0.0
    %88 = vmatpush1.msra.mxu0 %v64
    %89 = vmatprep.subr.mxu0 0.0
    %90 = vmatpush1.msra.mxu0 %v65
    %91 = vmatprep.subr.mxu0 0.0
    %92 = vmatpush1.msra.mxu0 %v66
    %93 = vmatprep.subr.mxu0 0.0
    %94 = vmatpush1.msra.mxu0 %v67
    %95 = vmatprep.subr.mxu0 0.0
    %96 = vmatpush1.msra.mxu0 %v68
    %97 = vmatprep.subr.mxu0 0.0
    %98 = vmatpush1.msra.mxu0 %v69
    %99 = vmatprep.subr.mxu0 0.0
    %100 = vmatpush1.msra.mxu0 %v70
    %101 = vmatprep.subr.mxu0 0.0
    %102 = vmatpush1.msra.mxu0 %v71
    %103 = vmatprep.subr.mxu0 0.0
    %104 = vmatpush1.msra.mxu0 %v72
    %105 = vmatprep.subr.mxu0 0.0
    %106 = vmatpush1.msra.mxu0 %v73
    %107 = vmatprep.subr.mxu0 0.0
    %108 = vmatpush1.msra.mxu0 %v74
    %109 = vmatprep.subr.mxu0 0.0
    %110 = vmatpush1.msra.mxu0 %v75
    %111 = vmatprep.subr.mxu0 0.0
    %112 = vmatpush1.msra.mxu0 %v76
    %113 = vmatprep.subr.mxu0 0.0
    %114 = vmatpush1.msra.mxu0 %v77
    %115 = vmatprep.subr.mxu0 0.0
    %116 = vmatpush1.msra.mxu0 %v78
    %117 = vmatprep.subr.mxu0 0.0
    %118 = vmatpush1.msra.mxu0 %v79
    %119 = vmatprep.subr.mxu0 0.0
    %120 = vmatpush1.msra.mxu0 0.0
    %121 = vmatprep.subr.mxu0 0.0
    %122 = vmatpush1.msra.mxu0 0.0
    %123 = vmatprep.subr.mxu0 0.0
    %124 = vmatpush1.msra.mxu0 0.0
    %125 = vmatprep.subr.mxu0 0.0
    %126 = vmatpush1.msra.mxu0 0.0
    %127 = vmatprep.subr.mxu0 0.0
    %128 = vmatpush1.msra.mxu0 0.0
    %129 = vmatprep.subr.mxu0 0.0
    %130 = vmatpush1.msra.mxu0 0.0
    %131 = vmatprep.subr.mxu0 0.0
    %132 = vmatpush1.msra.mxu0 0.0
    %133 = vmatprep.subr.mxu0 0.0
    %134 = vmatpush1.msra.mxu0 0.0
    %135 = vmatprep.subr.mxu0 0.0
    %136 = vmatpush1.msra.mxu0 0.0
    %137 = vmatprep.subr.mxu0 0.0
    %138 = vmatpush1.msra.mxu0 0.0
    %139 = vmatprep.subr.mxu0 0.0
    %140 = vmatpush1.msra.mxu0 0.0
    %141 = vmatprep.subr.mxu0 0.0
    %142 = vmatpush1.msra.mxu0 0.0
    %143 = vmatprep.subr.mxu0 0.0
    %144 = vmatpush1.msra.mxu0 0.0
    %145 = vmatprep.subr.mxu0 0.0
    %146 = vmatpush1.msra.mxu0 0.0
    %147 = vmatprep.subr.mxu0 0.0
    %148 = vmatpush1.msra.mxu0 0.0
    %149 = vmatprep.subr.mxu0 0.0
    %150 = vmatpush1.msra.mxu0 0.0
    %151 = vmatprep.mubr.f32.mxu0 0.0
    %152 = vmatmul.mubr.f32.gmra.mrb[0].mxu0 %v63
    %v153 = vpop.f32.mrb[0].mxu0
    %v154 = vadd.f32 %v85, %v153
    %v155 = vpop.f32.mrb[0].mxu0
    %156 = vdwg.mxu0
    %v157 = vmax.f32 %v154, 0.0
    %v158 = vld [vmem:[#allocation7] sm:$0xff]
    %v159 = vld [vmem:[#allocation7 + $0x8] sm:$0xff]
    %v160 = vld [vmem:[#allocation7 + $0x10] sm:$0xff]
    %v161 = vld [vmem:[#allocation7 + $0x18] sm:$0xff]
    %v162 = vld [vmem:[#allocation7 + $0x20] sm:$0xff]
    %v163 = vld [vmem:[#allocation7 + $0x28] sm:$0xff]
    %v164 = vld [vmem:[#allocation7 + $0x30] sm:$0xff]
    %v165 = vld [vmem:[#allocation7 + $0x38] sm:$0xff]
    %v166 = vld [vmem:[#allocation7 + $0x40] sm:$0xff]
    %v167 = vld [vmem:[#allocation7 + $0x48] sm:$0xff]
    %v168 = vld [vmem:[#allocation7 + $0x50] sm:$0xff]
    %v169 = vld [vmem:[#allocation7 + $0x58] sm:$0xff]
    %v170 = vld [vmem:[#allocation7 + $0x60] sm:$0xff]
    %v171 = vld [vmem:[#allocation7 + $0x68] sm:$0xff]
    %v172 = vld [vmem:[#allocation7 + $0x70] sm:$0xff]
    %v173 = vld [vmem:[#allocation7 + $0x78] sm:$0xff]
    %v174 = vld [vmem:[%s4] sm:$0x1]
    %v176 = vlaneseq
    %v177 = vshrl.u32 %v176, 7
    %v178 = vsub.s32 0, %v177
    %v179 = vrot.slane %v174, %v178
    %181 = vmatprep.subr.mxu0 0.0
    %182 = vmatpush1.msra.mxu0 %v158
    %183 = vmatprep.subr.mxu0 0.0
    %184 = vmatpush1.msra.mxu0 %v159
    %185 = vmatprep.subr.mxu0 0.0
    %186 = vmatpush1.msra.mxu0 %v160
    %187 = vmatprep.subr.mxu0 0.0
    %188 = vmatpush1.msra.mxu0 %v161
    %189 = vmatprep.subr.mxu0 0.0
    %190 = vmatpush1.msra.mxu0 %v162
    %191 = vmatprep.subr.mxu0 0.0
    %192 = vmatpush1.msra.mxu0 %v163
    %193 = vmatprep.subr.mxu0 0.0
    %194 = vmatpush1.msra.mxu0 %v164
    %195 = vmatprep.subr.mxu0 0.0
    %196 = vmatpush1.msra.mxu0 %v165
    %197 = vmatprep.subr.mxu0 0.0
    %198 = vmatpush1.msra.mxu0 %v166
    %199 = vmatprep.subr.mxu0 0.0
    %200 = vmatpush1.msra.mxu0 %v167
    %201 = vmatprep.subr.mxu0 0.0
    %202 = vmatpush1.msra.mxu0 %v168
    %203 = vmatprep.subr.mxu0 0.0
    %204 = vmatpush1.msra.mxu0 %v169
    %205 = vmatprep.subr.mxu0 0.0
    %206 = vmatpush1.msra.mxu0 %v170
    %207 = vmatprep.subr.mxu0 0.0
    %208 = vmatpush1.msra.mxu0 %v171
    %209 = vmatprep.subr.mxu0 0.0
    %210 = vmatpush1.msra.mxu0 %v172
    %211 = vmatprep.subr.mxu0 0.0
    %212 = vmatpush1.msra.mxu0 %v173
    %213 = vmatprep.subr.mxu0 0.0
    %214 = vmatpush1.msra.mxu0 0.0
    %215 = vmatprep.subr.mxu0 0.0
    %216 = vmatpush1.msra.mxu0 0.0
    %217 = vmatprep.subr.mxu0 0.0
    %218 = vmatpush1.msra.mxu0 0.0
    %219 = vmatprep.subr.mxu0 0.0
    %220 = vmatpush1.msra.mxu0 0.0
    %221 = vmatprep.subr.mxu0 0.0
    %222 = vmatpush1.msra.mxu0 0.0
    %223 = vmatprep.subr.mxu0 0.0
    %224 = vmatpush1.msra.mxu0 0.0
    %225 = vmatprep.subr.mxu0 0.0
    %226 = vmatpush1.msra.mxu0 0.0
    %227 = vmatprep.subr.mxu0 0.0
    %228 = vmatpush1.msra.mxu0 0.0
    %229 = vmatprep.subr.mxu0 0.0
    %230 = vmatpush1.msra.mxu0 0.0
    %231 = vmatprep.subr.mxu0 0.0
    %232 = vmatpush1.msra.mxu0 0.0
    %233 = vmatprep.subr.mxu0 0.0
    %234 = vmatpush1.msra.mxu0 0.0
    %235 = vmatprep.subr.mxu0 0.0
    %236 = vmatpush1.msra.mxu0 0.0
    %237 = vmatprep.subr.mxu0 0.0
    %238 = vmatpush1.msra.mxu0 0.0
    %239 = vmatprep.subr.mxu0 0.0
    %240 = vmatpush1.msra.mxu0 0.0
    %241 = vmatprep.subr.mxu0 0.0
    %242 = vmatpush1.msra.mxu0 0.0
    %243 = vmatprep.subr.mxu0 0.0
    %244 = vmatpush1.msra.mxu0 0.0
    %245 = vmatprep.mubr.f32.mxu0 0.0
    %246 = vmatmul.mubr.f32.gmra.mrb[0].mxu0 %v157
    %v247 = vpop.f32.mrb[0].mxu0
    %v248 = vadd.f32 %v179, %v247
    %v249 = vpop.f32.mrb[0].mxu0
    %250 = vdwg.mxu0
    %v251 = vld [vmem:[%s5] sm:$0xff]
    %v252 = vlaneseq
    %v253 = vand.u32 %v252, 127
    %vm254 = vcmp.gt.f32.partialorder %v251, 0.5
    %v255 = vsel %vm254, 0.0, -10000.0
    %vm256 = vcmp.lt.s32.totalorder %v253, 7
    %v257 = vsel %vm256, %v255, -1e+30
    %v258 = vadd.f32 %v248, %v257
    %259 = vmax.xlane.f32.xlu0 %v258
    %v260 = vpop.xlane.xlu0 %259
    %v261 = vsub.f32 %v258, %v260
    %v262 = vmul.f32 %v261, 1.442695
    %v263 = vpow.pop %v262
    %264 = vadd.xlane.f32.xlu0 %v263
    %v265 = vpop.xlane.xlu0 %264
    %v266 = vrcp.pop %v265
    %v267 = vmul.f32 %v263, %v266
    %268 = vst [vmem:[#allocation8] sm:$0xff] %v267
    // Predicated region
    $region38: #{tpu_custom_call.1} parent=1 // pred_check
      _
    $region39: #{tpu_custom_call.1} parent=1 // pred_check_branch
      %270 = sbr.rel (0) target = $region41
    $region40: #{tpu_custom_call.1} parent=1 // pred_region
      %s272 = ssub.s32 128, 128
      %273 = vsyncadd [#allocation4], %s272
      %s275 = sshll.u32 [#allocation8], 4
      %s276 = int_to_ptr.vmem [resolvable:$true] %s275
      %278 = dma.vmem_to_hbm [thread:$0]  %s276, 128, %s6, [#allocation4]
    $region41: #{tpu_custom_call.1} parent=1 // pred_fallthru
      _
    // Predicated region
    $region42: #{tpu_custom_call.1} parent=1 // pred_check
      _
    $region43: #{tpu_custom_call.1} parent=1 // pred_check_branch
      %280 = sbr.rel (0) target = $region45
    $region44: #{tpu_custom_call.1} parent=1 // pred_region
      %281 = dma.done [#allocation4], 128
    $region45: #{tpu_custom_call.1} parent=1 // pred_fallthru
      _
    %282 = vsyncpa [#allocation3], 1
    %283 = vsyncpa [#allocation6], 1
    %284 = vsyncpa [#allocation4], 1

</llo_original>
